<compile_context>
chip_gen: v7x
topology: tpu7x:2x2x1
jax: 0.10.0
libtpu: 0.0.40
codegen_flags: <defaults>
</compile_context>

<pallas_src>
import functools

import jax
import jax.numpy as jnp
from jax import lax
from jax.experimental import pallas as pl
from jax.experimental.pallas import tpu as pltpu


def preact_conv1d_kernel(x_ref, w_ref, b_ref, o_ref, *, K, pad, L, L_out, Bb,
                         mxu_dtype):
    # x_ref : (Bb, C_in, L)        raw input block (channel-major, L on lanes)
    # w_ref : (C_out, K*C_in)      weight in im2col order (tap-major, chan-minor)
    # b_ref : (C_out, 1)           f32 bias column (broadcast along lanes)
    # o_ref : (C_out, Bb*L_out)    lane-dense output block (sample-major lanes)
    C_in = x_ref.shape[1]

    # Pre-activation ReLU + zero padding, all in-register (no scratch round-trip).
    xr = jnp.maximum(x_ref[...], 0.0)                       # (Bb, C_in, L)
    if pad > 0:
        z = jnp.zeros((Bb, C_in, pad), dtype=xr.dtype)
        xp = jnp.concatenate([z, xr, z], axis=-1)           # (Bb, C_in, L+2*pad)
    else:
        xp = xr

    # im2col for ALL Bb samples at once: (K*C_in, Bb*L_out), lane = bb*L_out + l,
    # row = t*C_in + ci  (matches the wrapper's weight reordering).
    cols = []
    for bb in range(Bb):                                    # Bb is small & static
        cols.append(jnp.concatenate(
            [xp[bb, :, t:t + L_out] for t in range(K)], axis=0))
    col = cols[0] if Bb == 1 else jnp.concatenate(cols, axis=1)

    w = w_ref[...]                                          # (C_out, K*C_in)
    if mxu_dtype is not None:
        col = col.astype(mxu_dtype)                         # cast at the dot only
        w = w.astype(mxu_dtype)

    # Single wide MXU matmul per grid step, f32 accumulation, f32 bias add.
    acc = jnp.dot(w, col, preferred_element_type=jnp.float32) + b_ref[...]
    o_ref[...] = acc.astype(o_ref.dtype)


def _vmem_capacity_bytes():
    try:
        return int(pltpu.get_tpu_info().vmem_capacity_bytes)
    except Exception:
        return 64 * 1024 * 1024  # conservative default (v7x per-TensorCore)


def _choose_batch_block(B, C_in, C_out, K, L, L_out, itemsize, budget_bytes):
    def lane_ok(bb):
        # Output block minor dim must be a multiple of 128 or span the whole
        # (B*L_out) lane extent -- the TPU (8,128) BlockSpec constraint.
        return bb == B or (bb * L_out) % 128 == 0

    def fits(bb):
        in_blk = bb * C_in * L * itemsize
        out_blk = C_out * bb * L_out * itemsize
        w_bytes = (C_out * K * C_in + C_out) * itemsize
        # 2x double-buffered in/out + ~(K+2)x input for padded copy & im2col
        # columns + accumulator, with headroom.
        need = 2 * in_blk + 2 * out_blk + (K + 2) * in_blk + 2 * out_blk + 2 * w_bytes
        return need <= budget_bytes

    divs = [d for d in range(1, B + 1) if B % d == 0]
    valid = [d for d in divs if lane_ok(d) and fits(d)]
    if not valid:
        # Fall back to the smallest layout-legal divisor; true fix for very
        # large per-sample footprints is L-tiling (see TODO above).
        valid = [d for d in divs if lane_ok(d)] or [B]
    bb = max(valid)
    # Prefer >=2 grid steps (both v7x TensorCores busy) when a legal smaller
    # divisor keeps the output lane width a multiple of 128.
    if bb == B and B > 1:
        smaller = [d for d in valid if d <= B // 2 and (d * L_out) % 128 == 0]
        if smaller:
            bb = max(smaller)
    return bb


def preact_conv(x_ncl, weight, bias, pad, *, batch_block=None, mxu_dtype=None):
    """ReLU then Conv1d (stride 1). x_ncl: (B, C_in, L); weight: (C_out, C_in, K)."""
    B, C_in, L = x_ncl.shape
    C_out, _, K = weight.shape
    L_out = L + 2 * pad - K + 1

    # Generation-aware VMEM budget (v7x: 64 MiB physical; v5e/v6e: 128 MiB).
    cap = _vmem_capacity_bytes()
    vmem_limit = int(min(max(cap - 16 * 1024 * 1024, 32 * 1024 * 1024),
                         100 * 1024 * 1024))

    if batch_block is None:
        Bb = _choose_batch_block(B, C_in, C_out, K, L, L_out,
                                 x_ncl.dtype.itemsize,
                                 int(0.85 * vmem_limit))
    else:
        Bb = batch_block
    assert B % Bb == 0

    # Weight in im2col order: w2[co, t*C_in + ci] = weight[co, ci, t].  Tiny.
    w2 = jnp.transpose(weight, (0, 2, 1)).reshape(C_out, K * C_in)
    if mxu_dtype is not None:
        w2 = w2.astype(mxu_dtype)
    b2 = bias.reshape(C_out, 1).astype(jnp.float32)

    kernel = functools.partial(
        preact_conv1d_kernel, K=K, pad=pad, L=L, L_out=L_out, Bb=Bb,
        mxu_dtype=mxu_dtype)

    out_flat = pl.pallas_call(
        kernel,
        out_shape=jax.ShapeDtypeStruct((C_out, B * L_out), x_ncl.dtype),
        grid=(B // Bb,),
        in_specs=[
            pl.BlockSpec((Bb, C_in, L), lambda i: (i, 0, 0)),
            pl.BlockSpec((C_out, K * C_in), lambda i: (0, 0)),
            pl.BlockSpec((C_out, 1), lambda i: (0, 0)),
        ],
        out_specs=pl.BlockSpec((C_out, Bb * L_out), lambda i: (0, i)),
        compiler_params=pltpu.CompilerParams(
            dimension_semantics=("parallel",),
            vmem_limit_bytes=vmem_limit,
        ),
    )(x_ncl, w2, b2)

    # (C_out, B*L_out) lane-dense result -> (B, C_out, L_out) NCL output.
    return jnp.transpose(out_flat.reshape(C_out, B, L_out), (1, 0, 2))


if __name__ == "__main__":
    # Small shapes consistent with the module's forward: Conv1d over NCL input.
    B, C_in, C_out, K, pad, L = 2, 4, 8, 3, 1, 16

    key = jax.random.PRNGKey(0)
    kx, kw, kb = jax.random.split(key, 3)
    x = jax.random.normal(kx, (B, C_in, L), dtype=jnp.float32)
    weight = 0.1 * jax.random.normal(kw, (C_out, C_in, K), dtype=jnp.float32)
    bias = 0.1 * jax.random.normal(kb, (C_out,), dtype=jnp.float32)

    # Reference: plain-JAX ReLU + conv1d (same semantics as nn.Conv1d).
    ref = lax.conv_general_dilated(
        jnp.maximum(x, 0.0), weight,
        window_strides=(1,), padding=[(pad, pad)],
        dimension_numbers=("NCH", "OIH", "NCH"),
    ) + bias[None, :, None]

    # Exact-f32 path (matches the PyTorch module's numerics).
    out = jax.block_until_ready(preact_conv(x, weight, bias, pad))
    assert out.shape == (B, C_out, L + 2 * pad - K + 1)
    assert jnp.allclose(out, ref, atol=1e-5, rtol=1e-5)

    # bf16-MXU-operand path (f32 accumulation); looser tolerance by design.
    out_bf16 = jax.block_until_ready(
        preact_conv(x, weight, bias, pad, mxu_dtype=jnp.bfloat16))
    assert jnp.allclose(out_bf16, ref, atol=2e-2, rtol=2e-2)

    print("KERNEL_OK")
</pallas_src>

<mosaic_0001>
module attributes {stable_mosaic.version = 11 : i64} {
  func.func @preact_conv1d_kernel(%arg0: i32, %arg1: memref<2x4x16xf32, #tpu.memory_space<vmem>>, %arg2: memref<8x12xf32, #tpu.memory_space<vmem>>, %arg3: memref<8x1xf32, #tpu.memory_space<vmem>>, %arg4: memref<8x32xf32, #tpu.memory_space<vmem>>) attributes {dimension_semantics = [#tpu.dimension_semantics<parallel>], iteration_bounds = array<i64: 1>, scalar_prefetch = 0 : i64, scratch_operands = 0 : i64, tpu.core_type = #tpu.core_type<tc>, window_params = [{transform_indices = @transform_0, window_bounds = array<i64: 2, 4, 16>}, {pipeline_mode = #tpu.pipeline_mode<synchronous>, transform_indices = @transform_1, window_bounds = array<i64: 8, 12>}, {pipeline_mode = #tpu.pipeline_mode<synchronous>, transform_indices = @transform_2, window_bounds = array<i64: 8, 1>}, {transform_indices = @transform_3, window_bounds = array<i64: 8, 32>}]} {
    %c0 = arith.constant 0 : index
    %c0_0 = arith.constant 0 : index
    %c0_1 = arith.constant 0 : index
    %0 = vector.load %arg1[%c0, %c0_0, %c0_1] : memref<2x4x16xf32, #tpu.memory_space<vmem>>, vector<2x4x16xf32>
    %cst = arith.constant 0.000000e+00 : f32
    %1 = vector.broadcast %cst : f32 to vector<2x4x16xf32>
    %2 = arith.maximumf %0, %1 : vector<2x4x16xf32>
    %cst_2 = arith.constant 0.000000e+00 : f32
    %3 = vector.broadcast %cst_2 : f32 to vector<2x4x1xf32>
    %4 = tpu.concatenate %3, %2, %3 in 2 : vector<2x4x1xf32>, vector<2x4x16xf32>, vector<2x4x1xf32> -> vector<2x4x18xf32>
    %5 = vector.extract_strided_slice %4 {offsets = [0, 0, 0], sizes = [1, 4, 16], strides = [1, 1, 1]} : vector<2x4x18xf32> to vector<1x4x16xf32>
    %6 = vector.shape_cast %5 : vector<1x4x16xf32> to vector<4x16xf32>
    %7 = vector.extract_strided_slice %4 {offsets = [0, 0, 1], sizes = [1, 4, 16], strides = [1, 1, 1]} : vector<2x4x18xf32> to vector<1x4x16xf32>
    %8 = vector.shape_cast %7 : vector<1x4x16xf32> to vector<4x16xf32>
    %9 = vector.extract_strided_slice %4 {offsets = [0, 0, 2], sizes = [1, 4, 16], strides = [1, 1, 1]} : vector<2x4x18xf32> to vector<1x4x16xf32>
    %10 = vector.shape_cast %9 : vector<1x4x16xf32> to vector<4x16xf32>
    %11 = tpu.concatenate %6, %8, %10 in 0 : vector<4x16xf32>, vector<4x16xf32>, vector<4x16xf32> -> vector<12x16xf32>
    %12 = vector.extract_strided_slice %4 {offsets = [1, 0, 0], sizes = [1, 4, 16], strides = [1, 1, 1]} : vector<2x4x18xf32> to vector<1x4x16xf32>
    %13 = vector.shape_cast %12 : vector<1x4x16xf32> to vector<4x16xf32>
    %14 = vector.extract_strided_slice %4 {offsets = [1, 0, 1], sizes = [1, 4, 16], strides = [1, 1, 1]} : vector<2x4x18xf32> to vector<1x4x16xf32>
    %15 = vector.shape_cast %14 : vector<1x4x16xf32> to vector<4x16xf32>
    %16 = vector.extract_strided_slice %4 {offsets = [1, 0, 2], sizes = [1, 4, 16], strides = [1, 1, 1]} : vector<2x4x18xf32> to vector<1x4x16xf32>
    %17 = vector.shape_cast %16 : vector<1x4x16xf32> to vector<4x16xf32>
    %18 = tpu.concatenate %13, %15, %17 in 0 : vector<4x16xf32>, vector<4x16xf32>, vector<4x16xf32> -> vector<12x16xf32>
    %19 = tpu.concatenate %11, %18 in 1 : vector<12x16xf32>, vector<12x16xf32> -> vector<12x32xf32>
    %c0_3 = arith.constant 0 : index
    %c0_4 = arith.constant 0 : index
    %20 = vector.load %arg2[%c0_3, %c0_4] : memref<8x12xf32, #tpu.memory_space<vmem>>, vector<8x12xf32>
    %cst_5 = arith.constant dense<0.000000e+00> : vector<8x32xf32>
    %21 = tpu.matmul %20, %19, %cst_5 {dimension_numbers = #tpu.dot_dimension_numbers<[1], [0], [0], [1], [0, 0, 1, 1], [], []>} : vector<8x12xf32>, vector<12x32xf32>, vector<8x32xf32> -> vector<8x32xf32>
    %c0_6 = arith.constant 0 : index
    %c0_7 = arith.constant 0 : index
    %22 = vector.load %arg3[%c0_6, %c0_7] : memref<8x1xf32, #tpu.memory_space<vmem>>, vector<8x1xf32>
    %23 = vector.broadcast %22 : vector<8x1xf32> to vector<8x32xf32>
    %24 = arith.addf %21, %23 : vector<8x32xf32>
    %c0_8 = arith.constant 0 : index
    %c0_9 = arith.constant 0 : index
    %25 = vector.load %arg4[%c0_8, %c0_9] : memref<8x32xf32, #tpu.memory_space<vmem>>, vector<8x32xf32>
    tpu.vector_store %arg4[%c0_8, %c0_9], %24 {strides = array<i32>} : memref<8x32xf32, #tpu.memory_space<vmem>>, vector<8x32xf32>,
    return
  }
  func.func @transform_0(%arg0: i32) -> (i32, i32, i32) {
    %c0_i32 = arith.constant 0 : i32
    %c0_i32_0 = arith.constant 0 : i32
    %c0_i32_1 = arith.constant 0 : i32
    return %arg0, %c0_i32, %c0_i32_0 : i32, i32, i32
  }
  func.func @transform_1(%arg0: i32) -> (i32, i32) {
    %c0_i32 = arith.constant 0 : i32
    %c0_i32_0 = arith.constant 0 : i32
    %c0_i32_1 = arith.constant 0 : i32
    return %c0_i32, %c0_i32_0 : i32, i32
  }
  func.func @transform_2(%arg0: i32) -> (i32, i32) {
    %c0_i32 = arith.constant 0 : i32
    %c0_i32_0 = arith.constant 0 : i32
    %c0_i32_1 = arith.constant 0 : i32
    return %c0_i32, %c0_i32_0 : i32, i32
  }
  func.func @transform_3(%arg0: i32) -> (i32, i32) {
    %c0_i32 = arith.constant 0 : i32
    %c0_i32_0 = arith.constant 0 : i32
    return %c0_i32, %arg0 : i32, i32
  }
}

</mosaic_0001>

<llo_original>
// kernel: tpu_custom_call.1
$region0: #{tpu_custom_call.1}
  #allocation0 [shape = 'u32[]', space=smem, size = 0x4, offset = 0x4, fixed_abs, tag = 'smem constant byte address 0x4 - core index']
  #allocation1 [shape = 'u32[144,128]{1,0:T(1,128)}', space=vmem, size = 0x12000, scoped, tag = 'internal scratch']
  %s0 = inlined_call_operand.vmem [shape: f32[2,4,16], index: 0, kind: input, shape index: {}]
  %s1 = inlined_call_operand.hbm [shape: f32[8,12], index: 1, kind: input, shape index: {}]
  %s2 = inlined_call_operand.vmem [shape: f32[8,1], index: 2, kind: input, shape index: {}]
  %s3 = inlined_call_operand.hbm [shape: f32[8,32], index: 3, kind: output, shape index: {}]
  %s4 = sld [smem:[#allocation0]]
  $region26: #{tpu_custom_call.1} parent=0
    _
  %s6 = ssub.s32 1, %s4
  %s7 = scalar_select 0, %s6, %s4
  $region1: #{tpu_custom_call.1} parent=0
    #allocation2 [shape = 'u8[4096]{0}', space=vmem, size = 0x1000, scoped, tag = 'input window, operand 1, single buffered']
    #allocation3 [shape = 's32[1]{0}', space=sflag, size = 0x4, scoped, tag = 'scoped memory for tpu_custom_call.1']
    #allocation4 [shape = 's32[1]{0}', space=sflag, size = 0x4, scoped, tag = 'scoped memory for tpu_custom_call.1']
    #allocation5 [shape = 'u8[4096]{0}', space=vmem, size = 0x1000, scoped, tag = 'output window, operand 0, single buffered']
    %8 = vsyncpa [#allocation3], 0
    %9 = vsyncpa [#allocation4], 0
    // Predicated region
    $region2: #{tpu_custom_call.1} parent=1 // pred_check
      _
    $region3: #{tpu_custom_call.1} parent=1 // pred_check_branch
      %11 = sbr.rel (0) target = $region5
    $region4: #{tpu_custom_call.1} parent=1 // pred_region
      _
    $region5: #{tpu_custom_call.1} parent=1 // pred_fallthru
      _
    // Predicated region
    $region6: #{tpu_custom_call.1} parent=1 // pred_check
      _
    $region7: #{tpu_custom_call.1} parent=1 // pred_check_branch
      %13 = sbr.rel (0) target = $region9
    $region8: #{tpu_custom_call.1} parent=1 // pred_region
      %s15 = ssub.s32 128, 128
      %16 = vsyncadd [#allocation3], %s15
      %s18 = sshll.u32 [#allocation2], 4
      %s19 = int_to_ptr.vmem [resolvable:$true] %s18
      %21 = dma.hbm_to_vmem [thread:$0]  %s1, 128, %s19, [#allocation3]
    $region9: #{tpu_custom_call.1} parent=1 // pred_fallthru
      _
    // Predicated region
    $region10: #{tpu_custom_call.1} parent=1 // pred_check
      _
    $region11: #{tpu_custom_call.1} parent=1 // pred_check_branch
      %23 = sbr.rel (0) target = $region13
    $region12: #{tpu_custom_call.1} parent=1 // pred_region
      _
    $region13: #{tpu_custom_call.1} parent=1 // pred_fallthru
      _
    // Predicated region
    $region14: #{tpu_custom_call.1} parent=1 // pred_check
      _
    $region15: #{tpu_custom_call.1} parent=1 // pred_check_branch
      %25 = sbr.rel (0) target = $region17
    $region16: #{tpu_custom_call.1} parent=1 // pred_region
      %26 = dma.done [#allocation3], 128
    $region17: #{tpu_custom_call.1} parent=1 // pred_fallthru
      _
    %v27 = vld [vmem:[%s0] sm:$0xf]
    %v28 = vld [vmem:[%s0 + $0x4] sm:$0xf]
    %v29 = vmax.f32 %v27, 0.0
    %v30 = vmax.f32 %v28, 0.0
    %33 = vrot.lane.b32.xlu0 %v29, 1
    %v34 = vpop.permute.xlu0 %33
    %35 = vrot.lane.b32.xlu0 %v30, 1
    %v36 = vpop.permute.xlu0 %35
    %vm39 = vcmask 7168
    %v40 = vsel %vm39, 0.0, %v34
    %v41 = vsel %vm39, 0.0, %v36
    %vm42 = vcmask 138240
    %v43 = vsel %vm42, %v40, 0.0
    %v44 = vsel %vm42, %v41, 0.0
    %v46 = vrot.slane %v43, 4
    %47 = vrot.lane.b32.xlu0 %v46, 127
    %v48 = vpop.permute.xlu0 %47
    %50 = vrot.lane.b32.xlu0 %v43, 126
    %v51 = vpop.permute.xlu0 %50
    %vm53 = vcmask 1043456
    %v54 = vsel %vm53, %v43, %v48
    %v56 = vrot.slane %v44, 4
    %57 = vrot.lane.b32.xlu0 %v56, 127
    %v58 = vpop.permute.xlu0 %57
    %60 = vrot.lane.b32.xlu0 %v44, 126
    %v61 = vpop.permute.xlu0 %60
    %v62 = vsel %vm53, %v44, %v58
    %64 = vrot.lane.b32.xlu0 %v62, 16
    %v65 = vpop.permute.xlu0 %64
    %66 = vrot.lane.b32.xlu0 %v61, 16
    %v67 = vpop.permute.xlu0 %66
    %vm70 = vcmask 130048
    %v71 = vsel %vm70, %v54, %v65
    %v72 = vsel %vm70, %v51, %v67
    %v73 = vld [vmem:[#allocation2] sm:$0xff]
    %v74 = vld [vmem:[%s2] sm:$0xff]
    %76 = vset.pattern.permute.xlu0 0
    %77 = vperm.xlu0 %76, %v74
    %v78 = vpop.permute.xlu0 %77
    %vm80 = vcmask 97280
    %v82 = vsel %vm80, %v73, 0
    %v85 = vsel %vm53, %v72, 0
    %87 = vmatprep.subr.mxu0 0.0
    %88 = vmatpush1.msra.mxu0 %v71
    %89 = vmatprep.subr.mxu0 0.0
    %90 = vmatpush1.msra.mxu0 %v85
    %91 = vmatprep.subr.mxu0 0.0
    %92 = vmatpush1.msra.mxu0 0.0
    %93 = vmatprep.subr.mxu0 0.0
    %94 = vmatpush1.msra.mxu0 0.0
    %95 = vmatprep.subr.mxu0 0.0
    %96 = vmatpush1.msra.mxu0 0.0
    %97 = vmatprep.subr.mxu0 0.0
    %98 = vmatpush1.msra.mxu0 0.0
    %99 = vmatprep.subr.mxu0 0.0
    %100 = vmatpush1.msra.mxu0 0.0
    %101 = vmatprep.subr.mxu0 0.0
    %102 = vmatpush1.msra.mxu0 0.0
    %103 = vmatprep.subr.mxu0 0.0
    %104 = vmatpush1.msra.mxu0 0.0
    %105 = vmatprep.subr.mxu0 0.0
    %106 = vmatpush1.msra.mxu0 0.0
    %107 = vmatprep.subr.mxu0 0.0
    %108 = vmatpush1.msra.mxu0 0.0
    %109 = vmatprep.subr.mxu0 0.0
    %110 = vmatpush1.msra.mxu0 0.0
    %111 = vmatprep.subr.mxu0 0.0
    %112 = vmatpush1.msra.mxu0 0.0
    %113 = vmatprep.subr.mxu0 0.0
    %114 = vmatpush1.msra.mxu0 0.0
    %115 = vmatprep.subr.mxu0 0.0
    %116 = vmatpush1.msra.mxu0 0.0
    %117 = vmatprep.subr.mxu0 0.0
    %118 = vmatpush1.msra.mxu0 0.0
    %119 = vmatprep.subr.mxu0 0.0
    %120 = vmatpush1.msra.mxu0 0.0
    %121 = vmatprep.subr.mxu0 0.0
    %122 = vmatpush1.msra.mxu0 0.0
    %123 = vmatprep.subr.mxu0 0.0
    %124 = vmatpush1.msra.mxu0 0.0
    %125 = vmatprep.subr.mxu0 0.0
    %126 = vmatpush1.msra.mxu0 0.0
    %127 = vmatprep.subr.mxu0 0.0
    %128 = vmatpush1.msra.mxu0 0.0
    %129 = vmatprep.subr.mxu0 0.0
    %130 = vmatpush1.msra.mxu0 0.0
    %131 = vmatprep.subr.mxu0 0.0
    %132 = vmatpush1.msra.mxu0 0.0
    %133 = vmatprep.subr.mxu0 0.0
    %134 = vmatpush1.msra.mxu0 0.0
    %135 = vmatprep.subr.mxu0 0.0
    %136 = vmatpush1.msra.mxu0 0.0
    %137 = vmatprep.subr.mxu0 0.0
    %138 = vmatpush1.msra.mxu0 0.0
    %139 = vmatprep.subr.mxu0 0.0
    %140 = vmatpush1.msra.mxu0 0.0
    %141 = vmatprep.subr.mxu0 0.0
    %142 = vmatpush1.msra.mxu0 0.0
    %143 = vmatprep.subr.mxu0 0.0
    %144 = vmatpush1.msra.mxu0 0.0
    %145 = vmatprep.subr.mxu0 0.0
    %146 = vmatpush1.msra.mxu0 0.0
    %147 = vmatprep.subr.mxu0 0.0
    %148 = vmatpush1.msra.mxu0 0.0
    %149 = vmatprep.subr.mxu0 0.0
    %150 = vmatpush1.msra.mxu0 0.0
    %151 = vmatprep.mubr.f32.mxu0 0.0
    %152 = vmatmul.mubr.f32.gmra.mrb[0].mxu0 %v82
    %v153 = vpop.f32.mrb[0].mxu0
    %v154 = vadd.f32 %v78, %v153
    %v155 = vpop.f32.mrb[0].mxu0
    %156 = vdwg.mxu0
    %vm157 = vcmask 261120
    %158 = vst.msk [vmem:[#allocation5] sm:$0xff] %vm157, %v154
    // Predicated region
    $region18: #{tpu_custom_call.1} parent=1 // pred_check
      _
    $region19: #{tpu_custom_call.1} parent=1 // pred_check_branch
      %160 = sbr.rel (0) target = $region21
    $region20: #{tpu_custom_call.1} parent=1 // pred_region
      %s162 = ssub.s32 128, 128
      %163 = vsyncadd [#allocation4], %s162
      %s165 = sshll.u32 [#allocation5], 4
      %s166 = int_to_ptr.vmem [resolvable:$true] %s165
      %168 = dma.vmem_to_hbm [thread:$0]  %s166, 128, %s3, [#allocation4]
    $region21: #{tpu_custom_call.1} parent=1 // pred_fallthru
      _
    // Predicated region
    $region22: #{tpu_custom_call.1} parent=1 // pred_check
      _
    $region23: #{tpu_custom_call.1} parent=1 // pred_check_branch
      %170 = sbr.rel (0) target = $region25
    $region24: #{tpu_custom_call.1} parent=1 // pred_region
      %171 = dma.done [#allocation4], 128
    $region25: #{tpu_custom_call.1} parent=1 // pred_fallthru
      _
    %172 = vsyncpa [#allocation3], 1
    %173 = vsyncpa [#allocation4], 1

</llo_original>
